<compile_context>
chip_gen: v6e
topology: v6e:2x2x1
jax: 0.10.0
libtpu: 0.0.40
codegen_flags: <defaults>
</compile_context>

<pallas_src>
import jax
import jax.numpy as jnp
from jax.experimental import pallas as pl
from jax.experimental.pallas import tpu as pltpu


def _swish_kernel(x_ref, o_ref):
    # Compute in f32 internally (free: kernel is HBM-bound), single EUP op per
    # element via the tanh form of sigmoid: sigmoid(x) = 0.5*tanh(0.5*x) + 0.5.
    x = x_ref[...].astype(jnp.float32)
    o_ref[...] = (x * (0.5 * jnp.tanh(0.5 * x) + 0.5)).astype(o_ref.dtype)


def swish_v2(feat: jax.Array, *, target_block_bytes: int = 4 << 20,
             donate: bool = False) -> jax.Array:
    """Forward pass of SwishV2: feat * sigmoid(feat). Any shape / float dtype.

    Set donate=True only if the input buffer is genuinely dead after the call
    (enables in-place HBM reuse via input_output_aliases).
    """
    orig_shape = feat.shape
    dtype = feat.dtype
    n = feat.size
    if n == 0:
        return feat

    itemsize = jnp.dtype(dtype).itemsize
    # Packed sublane granule: 8 for f32, 16 for bf16, 32 for int8/fp8.
    granule = max(8, 32 // itemsize)

    # ---- choose a free (no-copy) 2-D view ----------------------------------
    lanes = 0
    for cand in (1024, 512, 256, 128):
        if n % cand == 0:
            lanes = cand
            break

    if lanes:
        rows, cols = n // lanes, lanes
        x2d = feat.reshape(rows, cols)
    else:
        # Element count not a multiple of 128: take the original last dim
        # whole (full-extent block dim is legal even if not 128-aligned, at
        # the cost of lane-masked stores). No pad / slice HBM copies.
        cols = orig_shape[-1] if len(orig_shape) >= 2 else n
        rows = n // cols
        if cols * granule * itemsize <= target_block_bytes:
            x2d = feat.reshape(rows, cols)
        else:
            # TODO(synk): pathological huge non-128-multiple last dim; fall
            # back to a <128-element pad rather than blowing VMEM.
            padded_n = pl.cdiv(n, 128) * 128
            rows, cols = padded_n // 128, 128
            x2d = jnp.pad(feat.reshape(-1), (0, padded_n - n)).reshape(rows, cols)

    # ---- tile size ----------------------------------------------------------
    max_rows = max(granule, target_block_bytes // (cols * itemsize))
    tile_rows = min(rows, max_rows)
    if tile_rows < rows:
        tile_rows = max(granule, (tile_rows // granule) * granule)
    # Make sure medium tensors produce >=2 grid steps so both v7x TensorCores
    # get work (tiny tensors are left as a single block to avoid overhead).
    if (tile_rows >= rows and rows >= 2 * granule
            and rows * cols * itemsize > (512 << 10)):
        tile_rows = ((pl.cdiv(rows, 2) + granule - 1) // granule) * granule

    grid = (pl.cdiv(rows, tile_rows),)  # ragged last row-block handled by Pallas

    block_bytes = tile_rows * cols * itemsize
    # 2 blocked specs (in + out) x 2 pipeline buffers each, plus headroom.
    # Explicit limit so 4 MiB blocks don't trip v5e's 16 MiB scoped default.
    vmem_limit = min(48 << 20, max(32 << 20, 4 * block_bytes + (8 << 20)))

    total = rows * cols
    out2d = pl.pallas_call(
        _swish_kernel,
        out_shape=jax.ShapeDtypeStruct((rows, cols), dtype),
        grid=grid,
        in_specs=[pl.BlockSpec((tile_rows, cols), lambda i: (i, 0))],
        out_specs=pl.BlockSpec((tile_rows, cols), lambda i: (i, 0)),
        input_output_aliases=({0: 0} if donate else {}),
        compiler_params=pltpu.CompilerParams(
            dimension_semantics=("parallel",),
            vmem_limit_bytes=vmem_limit,
        ),
        cost_estimate=pl.CostEstimate(
            flops=4 * total,
            transcendentals=total,
            bytes_accessed=2 * total * itemsize,
        ),
    )(x2d)

    out = out2d
    if rows * cols != n:  # only the pathological pad-fallback path
        out = out.reshape(-1)[:n]
    return out.reshape(orig_shape)


# TODO(synk): SwishFunction.backward (ctx.grad stashing) is not implemented;
# only the forward pass is translated.


if __name__ == "__main__":
    key = jax.random.PRNGKey(0)

    # Shape implied by the module usage (NCHW activation).
    x = jax.random.normal(key, (2, 4, 16, 16), dtype=jnp.float32)
    out = jax.block_until_ready(swish_v2(x))
    ref = x * jax.nn.sigmoid(x)
    assert out.shape == x.shape and out.dtype == x.dtype
    assert jnp.allclose(out, ref, atol=1e-5, rtol=1e-5)

    # Non-multiple-of-128 element count: exercises the copy-free ragged path.
    x2 = jax.random.normal(jax.random.PRNGKey(1), (3, 5, 7, 11), dtype=jnp.float32)
    out2 = jax.block_until_ready(swish_v2(x2))
    ref2 = x2 * jax.nn.sigmoid(x2)
    assert out2.shape == x2.shape and out2.dtype == x2.dtype
    assert jnp.allclose(out2, ref2, atol=1e-5, rtol=1e-5)

    # bf16 input: exercises the packed-sublane granule + f32-internal compute.
    xb = jax.random.normal(jax.random.PRNGKey(2), (2, 4, 16, 16), dtype=jnp.bfloat16)
    outb = jax.block_until_ready(swish_v2(xb))
    refb = xb.astype(jnp.float32)
    refb = (refb * jax.nn.sigmoid(refb)).astype(jnp.bfloat16)
    assert outb.shape == xb.shape and outb.dtype == xb.dtype
    assert jnp.allclose(outb.astype(jnp.float32), refb.astype(jnp.float32),
                        atol=2e-2, rtol=2e-2)

    # Multi-block + ragged last row-block grid path (small target block size).
    x3 = jax.random.normal(jax.random.PRNGKey(3), (2, 8, 36, 32), dtype=jnp.float32)
    out3 = jax.block_until_ready(swish_v2(x3, target_block_bytes=32 << 10))
    ref3 = x3 * jax.nn.sigmoid(x3)
    assert out3.shape == x3.shape and out3.dtype == x3.dtype
    assert jnp.allclose(out3, ref3, atol=1e-5, rtol=1e-5)

    print("KERNEL_OK")
</pallas_src>

<mosaic_0001>
module attributes {stable_mosaic.version = 11 : i64} {
  func.func @_swish_kernel(%arg0: i32, %arg1: memref<2x1024xf32, #tpu.memory_space<vmem>>, %arg2: memref<2x1024xf32, #tpu.memory_space<vmem>>) attributes {dimension_semantics = [#tpu.dimension_semantics<parallel>], iteration_bounds = array<i64: 1>, scalar_prefetch = 0 : i64, scratch_operands = 0 : i64, tpu.core_type = #tpu.core_type<tc>, window_params = [{transform_indices = @transform_0, window_bounds = array<i64: 2, 1024>}, {transform_indices = @transform_1, window_bounds = array<i64: 2, 1024>}]} {
    %c0 = arith.constant 0 : index
    %c0_0 = arith.constant 0 : index
    %0 = vector.load %arg1[%c0, %c0_0] : memref<2x1024xf32, #tpu.memory_space<vmem>>, vector<2x1024xf32>
    %cst = arith.constant 5.000000e-01 : f32
    %1 = vector.broadcast %cst : f32 to vector<2x1024xf32>
    %2 = arith.mulf %1, %0 : vector<2x1024xf32>
    %3 = math.tanh %2 : vector<2x1024xf32>
    %cst_1 = arith.constant 5.000000e-01 : f32
    %4 = vector.broadcast %cst_1 : f32 to vector<2x1024xf32>
    %5 = arith.mulf %4, %3 : vector<2x1024xf32>
    %cst_2 = arith.constant 5.000000e-01 : f32
    %6 = vector.broadcast %cst_2 : f32 to vector<2x1024xf32>
    %7 = arith.addf %5, %6 : vector<2x1024xf32>
    %8 = arith.mulf %0, %7 : vector<2x1024xf32>
    %c0_3 = arith.constant 0 : index
    %c0_4 = arith.constant 0 : index
    %9 = vector.load %arg2[%c0_3, %c0_4] : memref<2x1024xf32, #tpu.memory_space<vmem>>, vector<2x1024xf32>
    tpu.vector_store %arg2[%c0_3, %c0_4], %8 {strides = array<i32>} : memref<2x1024xf32, #tpu.memory_space<vmem>>, vector<2x1024xf32>,
    return
  }
  func.func @transform_0(%arg0: i32) -> (i32, i32) {
    %c0_i32 = arith.constant 0 : i32
    %c0_i32_0 = arith.constant 0 : i32
    return %arg0, %c0_i32 : i32, i32
  }
  func.func @transform_1(%arg0: i32) -> (i32, i32) {
    %c0_i32 = arith.constant 0 : i32
    %c0_i32_0 = arith.constant 0 : i32
    return %arg0, %c0_i32 : i32, i32
  }
}

</mosaic_0001>

<llo_original>
// kernel: tpu_custom_call.1
$region0: #{tpu_custom_call.1}
  #allocation0 [shape = 'u32[]', space=smem, size = 0x4, offset = 0x4, fixed_abs, tag = 'smem constant byte address 0x4 - core index']
  #allocation1 [shape = 'u32[144,128]{1,0:T(1,128)}', space=vmem, size = 0x12000, scoped, tag = 'internal scratch']
  %s0 = inlined_call_operand.hbm [shape: f32[2,1024], index: 0, kind: input, shape index: {}]
  %s1 = inlined_call_operand.hbm [shape: f32[2,1024], index: 1, kind: output, shape index: {}]
  %s2 = sld [smem:[#allocation0]]
  $region18: #{tpu_custom_call.1} parent=0
    _
  %s4 = ssub.s32 1, %s2
  %s5 = scalar_select 0, %s4, %s2
  $region1: #{tpu_custom_call.1} parent=0
    #allocation2 [shape = 'u8[8192]{0}', space=vmem, size = 0x2000, scoped, tag = 'input window, operand 0, single buffered']
    #allocation3 [shape = 's32[1]{0}', space=sflag, size = 0x4, scoped, tag = 'scoped memory for tpu_custom_call.1']
    #allocation4 [shape = 's32[1]{0}', space=sflag, size = 0x4, scoped, tag = 'scoped memory for tpu_custom_call.1']
    #allocation5 [shape = 'u8[8192]{0}', space=vmem, size = 0x2000, scoped, tag = 'output window, operand 0, single buffered']
    %6 = vsyncpa [#allocation3], 0
    %7 = vsyncpa [#allocation4], 0
    // Predicated region
    $region2: #{tpu_custom_call.1} parent=1 // pred_check
      _
    $region3: #{tpu_custom_call.1} parent=1 // pred_check_branch
      %9 = sbr.rel (0) target = $region5
    $region4: #{tpu_custom_call.1} parent=1 // pred_region
      %s11 = ssub.s32 256, 256
      %12 = vsyncadd [#allocation3], %s11
      %s14 = sshll.u32 [#allocation2], 4
      %s15 = int_to_ptr.vmem [resolvable:$true] %s14
      %17 = dma.hbm_to_vmem [thread:$0]  %s0, 256, %s15, [#allocation3]
    $region5: #{tpu_custom_call.1} parent=1 // pred_fallthru
      _
    // Predicated region
    $region6: #{tpu_custom_call.1} parent=1 // pred_check
      _
    $region7: #{tpu_custom_call.1} parent=1 // pred_check_branch
      %19 = sbr.rel (0) target = $region9
    $region8: #{tpu_custom_call.1} parent=1 // pred_region
      %20 = dma.done [#allocation3], 256
    $region9: #{tpu_custom_call.1} parent=1 // pred_fallthru
      _
    %v21 = vld [vmem:[#allocation2] sm:$0xff]
    %v22 = vld [vmem:[#allocation2 + $0x8] sm:$0xff]
    %v23 = vmul.f32 %v21, 0.5
    %v24 = vmul.f32 %v22, 0.5
    %v25 = vtanh.pop %v23
    %v26 = vtanh.pop %v24
    %v27 = vmul.f32 %v25, 0.5
    %v28 = vmul.f32 %v26, 0.5
    %v29 = vadd.f32 %v27, 0.5
    %v30 = vadd.f32 %v28, 0.5
    %v31 = vmul.f32 %v21, %v29
    %v32 = vmul.f32 %v22, %v30
    %33 = vst [vmem:[#allocation5] sm:$0xff] %v31
    %34 = vst [vmem:[#allocation5 + $0x8] sm:$0xff] %v32
    // Predicated region
    $region10: #{tpu_custom_call.1} parent=1 // pred_check
      _
    $region11: #{tpu_custom_call.1} parent=1 // pred_check_branch
      %36 = sbr.rel (0) target = $region13
    $region12: #{tpu_custom_call.1} parent=1 // pred_region
      %s38 = ssub.s32 256, 256
      %39 = vsyncadd [#allocation4], %s38
      %s41 = sshll.u32 [#allocation5], 4
      %s42 = int_to_ptr.vmem [resolvable:$true] %s41
      %44 = dma.vmem_to_hbm [thread:$0]  %s42, 256, %s1, [#allocation4]
    $region13: #{tpu_custom_call.1} parent=1 // pred_fallthru
      _
    // Predicated region
    $region14: #{tpu_custom_call.1} parent=1 // pred_check
      _
    $region15: #{tpu_custom_call.1} parent=1 // pred_check_branch
      %46 = sbr.rel (0) target = $region17
    $region16: #{tpu_custom_call.1} parent=1 // pred_region
      %47 = dma.done [#allocation4], 256
    $region17: #{tpu_custom_call.1} parent=1 // pred_fallthru
      _
    %48 = vsyncpa [#allocation3], 1
    %49 = vsyncpa [#allocation4], 1

</llo_original>
